<compile_context>
chip_gen: v7x
topology: tpu7x:2x2x1
jax: 0.10.0
libtpu: 0.0.40
codegen_flags: <defaults>
</compile_context>

<pallas_src>
import numpy as np
import jax
import jax.numpy as jnp
from jax import lax
from jax.experimental import pallas as pl
from jax.experimental.pallas import tpu as pltpu


def _l2_normalize(v, eps=1e-12):
    return v / (jnp.linalg.norm(v) + eps)


def spectral_normalize(weight, key, n_iters=20):
    """weight: (C_out, C_in, kD, kH, kW). Deterministic power iteration (eval-mode SN)."""
    c_out = weight.shape[0]
    w_mat = weight.reshape(c_out, -1)
    # TODO(synk): PyTorch initializes `u` with torch RNG; we use a fixed JAX key instead.
    u = _l2_normalize(jax.random.normal(key, (c_out,), dtype=weight.dtype))
    for _ in range(n_iters):
        v = _l2_normalize(w_mat.T @ u)
        u = _l2_normalize(w_mat @ v)
    sigma = u @ (w_mat @ v)
    return weight / sigma


def conv3d_block_forward(x_ncdhw, weight, bias, *, stride=1, padding=1, neg_slope=0.2):
    """x_ncdhw: (N, C_in, D, H, W); weight: (C_out, C_in, K, K, K); bias: (C_out,)."""
    assert stride == 1, "this synthetic kernel implements the default stride=1 path"
    N, C_in, D, H, W = x_ncdhw.shape
    C_out, C_in_w, K, K2, K3 = weight.shape
    assert C_in == C_in_w and K == K2 == K3

    D_out = D + 2 * padding - K + 1
    H_out = H + 2 * padding - K + 1
    W_out = W + 2 * padding - K + 1
    DHW = D_out * H_out * W_out

    KKKC = K * K * K * C_in
    KKKC_pad = ((KKKC + 127) // 128) * 128          # pad contraction to a full MXU pass

    # ---- glue (plain JAX): layout conversion, padding, im2col packing ----
    # TODO(synk): at production shapes build im2col tiles inside the kernel (halo
    # BlockSpecs) instead of materializing the full im2col operand in HBM.
    x_cl = jnp.transpose(x_ncdhw, (0, 2, 3, 4, 1))                      # NDHWC
    x_pad = jnp.pad(x_cl, ((0, 0), (padding, padding), (padding, padding),
                           (padding, padding), (0, 0)))

    taps = []
    for kd in range(K):
        for kh in range(K):
            for kw in range(K):
                taps.append(x_pad[:, kd:kd + D_out, kh:kh + H_out, kw:kw + W_out, :])
    # (N, D_out, H_out, W_out, K^3, C_in) -> (N, K^3*C_in, D_out*H_out*W_out)
    patches = jnp.stack(taps, axis=-2)
    patches = jnp.transpose(patches, (0, 4, 5, 1, 2, 3)).reshape(N, KKKC, DHW)
    patches = jnp.pad(patches, ((0, 0), (0, KKKC_pad - KKKC), (0, 0)))

    # weight (C_out, C_in, kD, kH, kW) -> (C_out, kD, kH, kW, C_in) -> (C_out, K^3*C_in)
    w_packed = jnp.transpose(weight, (0, 2, 3, 4, 1)).reshape(C_out, KKKC)
    w_packed = jnp.pad(w_packed, ((0, 0), (0, KKKC_pad - KKKC)))
    b_packed = bias.reshape(C_out, 1)

    # ---- Pallas kernel: one (C_out, K^3*C_in) x (K^3*C_in, DHW) GEMM + bias + LeakyReLU ----
    def kernel(p_ref, w_ref, b_ref, o_ref):
        patch = p_ref[0]                                    # (KKKC_pad, DHW)
        acc = jnp.dot(w_ref[...], patch,
                      preferred_element_type=jnp.float32)   # (C_out, DHW), lane-dense
        acc = acc + b_ref[...]                              # (C_out, 1) lane-broadcast
        act = jnp.where(acc >= 0, acc, neg_slope * acc)     # LeakyReLU(0.2)
        o_ref[0] = act.astype(o_ref.dtype)

    grid_spec = pltpu.PrefetchScalarGridSpec(
        num_scalar_prefetch=0,
        grid=(N,),                                          # 2 parallel items (v7x: 2 TCs)
        in_specs=[
            pl.BlockSpec((1, KKKC_pad, DHW), lambda n: (n, 0, 0)),
            pl.BlockSpec((C_out, KKKC_pad), lambda n: (0, 0)),
            pl.BlockSpec((C_out, 1), lambda n: (0, 0)),
        ],
        out_specs=pl.BlockSpec((1, C_out, DHW), lambda n: (n, 0, 0)),
    )

    out_flat = pl.pallas_call(
        kernel,
        out_shape=jax.ShapeDtypeStruct((N, C_out, DHW), x_ncdhw.dtype),
        grid_spec=grid_spec,
        compiler_params=pltpu.CompilerParams(
            dimension_semantics=("parallel",)),
    )(patches, w_packed, b_packed)

    # Output is already in NC(DHW) order: just reshape, no transpose needed.
    return out_flat.reshape(N, C_out, D_out, H_out, W_out)


def reference_forward(x_ncdhw, weight, bias, *, padding=1, neg_slope=0.2):
    out = lax.conv_general_dilated(
        x_ncdhw, weight, window_strides=(1, 1, 1),
        padding=[(padding, padding)] * 3,
        dimension_numbers=("NCDHW", "OIDHW", "NCDHW"))
    out = out + bias.reshape(1, -1, 1, 1, 1)
    return jnp.where(out >= 0, out, neg_slope * out)


if __name__ == "__main__":
    # Conv3dBlock(in_channels=4, out_channels=8, kernel_size=3, padding=1)  (norm='SN')
    N, C_in, D, H, W = 2, 4, 8, 8, 8
    C_out, K, padding = 8, 3, 1

    key = jax.random.PRNGKey(0)
    kx, kw, kb, ku = jax.random.split(key, 4)

    x = jax.random.normal(kx, (N, C_in, D, H, W), dtype=jnp.float32)
    fan_in = C_in * K * K * K
    bound = 1.0 / np.sqrt(fan_in)
    weight = jax.random.uniform(kw, (C_out, C_in, K, K, K),
                                minval=-bound, maxval=bound, dtype=jnp.float32)
    bias = jax.random.uniform(kb, (C_out,), minval=-bound, maxval=bound,
                              dtype=jnp.float32)

    w_sn = spectral_normalize(weight, ku)

    out = conv3d_block_forward(x, w_sn, bias, padding=padding)
    out = jax.block_until_ready(out)

    ref = jax.block_until_ready(reference_forward(x, w_sn, bias, padding=padding))
    assert out.shape == (N, C_out, D, H, W), out.shape
    np.testing.assert_allclose(np.asarray(out), np.asarray(ref), atol=1e-4, rtol=1e-4)

    print("KERNEL_OK")
</pallas_src>

<mosaic_0001>
module attributes {stable_mosaic.version = 11 : i64} {
  func.func @kernel(%arg0: i32, %arg1: memref<1x128x512xf32, #tpu.memory_space<vmem>>, %arg2: memref<8x128xf32, #tpu.memory_space<vmem>>, %arg3: memref<8x1xf32, #tpu.memory_space<vmem>>, %arg4: memref<1x8x512xf32, #tpu.memory_space<vmem>>) attributes {dimension_semantics = [#tpu.dimension_semantics<parallel>], iteration_bounds = array<i64: 2>, scalar_prefetch = 0 : i64, scratch_operands = 0 : i64, tpu.core_type = #tpu.core_type<tc>, window_params = [{transform_indices = @transform_0, window_bounds = array<i64: 1, 128, 512>}, {pipeline_mode = #tpu.pipeline_mode<synchronous>, transform_indices = @transform_1, window_bounds = array<i64: 8, 128>}, {pipeline_mode = #tpu.pipeline_mode<synchronous>, transform_indices = @transform_2, window_bounds = array<i64: 8, 1>}, {transform_indices = @transform_3, window_bounds = array<i64: 1, 8, 512>}]} {
    %c0 = arith.constant 0 : index
    %c0_0 = arith.constant 0 : index
    %c0_1 = arith.constant 0 : index
    %0 = vector.load %arg1[%c0, %c0_0, %c0_1] : memref<1x128x512xf32, #tpu.memory_space<vmem>>, vector<1x128x512xf32>
    %1 = vector.shape_cast %0 : vector<1x128x512xf32> to vector<128x512xf32>
    %c0_2 = arith.constant 0 : index
    %c0_3 = arith.constant 0 : index
    %2 = vector.load %arg2[%c0_2, %c0_3] : memref<8x128xf32, #tpu.memory_space<vmem>>, vector<8x128xf32>
    %cst = arith.constant dense<0.000000e+00> : vector<8x512xf32>
    %3 = tpu.matmul %2, %1, %cst {dimension_numbers = #tpu.dot_dimension_numbers<[1], [0], [0], [1], [0, 0, 1, 1], [], []>} : vector<8x128xf32>, vector<128x512xf32>, vector<8x512xf32> -> vector<8x512xf32>
    %c0_4 = arith.constant 0 : index
    %c0_5 = arith.constant 0 : index
    %4 = vector.load %arg3[%c0_4, %c0_5] : memref<8x1xf32, #tpu.memory_space<vmem>>, vector<8x1xf32>
    %5 = vector.broadcast %4 : vector<8x1xf32> to vector<8x512xf32>
    %6 = arith.addf %3, %5 : vector<8x512xf32>
    %cst_6 = arith.constant 0.000000e+00 : f32
    %7 = vector.broadcast %cst_6 : f32 to vector<8x512xf32>
    %8 = arith.cmpf oge, %6, %7 : vector<8x512xf32>
    %cst_7 = arith.constant 2.000000e-01 : f32
    %9 = vector.broadcast %cst_7 : f32 to vector<8x512xf32>
    %10 = arith.mulf %9, %6 : vector<8x512xf32>
    %11 = arith.select %8, %6, %10 : vector<8x512xi1>, vector<8x512xf32>
    %c0_8 = arith.constant 0 : index
    %c0_9 = arith.constant 0 : index
    %c0_10 = arith.constant 0 : index
    %12 = vector.load %arg4[%c0_8, %c0_9, %c0_10] : memref<1x8x512xf32, #tpu.memory_space<vmem>>, vector<1x8x512xf32>
    %13 = vector.shape_cast %12 : vector<1x8x512xf32> to vector<8x512xf32>
    %14 = vector.shape_cast %11 : vector<8x512xf32> to vector<1x8x512xf32>
    tpu.vector_store %arg4[%c0_8, %c0_9, %c0_10], %14 {strides = array<i32>} : memref<1x8x512xf32, #tpu.memory_space<vmem>>, vector<1x8x512xf32>,
    return
  }
  func.func @transform_0(%arg0: i32) -> (i32, i32, i32) {
    %c0_i32 = arith.constant 0 : i32
    %c0_i32_0 = arith.constant 0 : i32
    %c0_i32_1 = arith.constant 0 : i32
    return %arg0, %c0_i32, %c0_i32_0 : i32, i32, i32
  }
  func.func @transform_1(%arg0: i32) -> (i32, i32) {
    %c0_i32 = arith.constant 0 : i32
    %c0_i32_0 = arith.constant 0 : i32
    %c0_i32_1 = arith.constant 0 : i32
    return %c0_i32, %c0_i32_0 : i32, i32
  }
  func.func @transform_2(%arg0: i32) -> (i32, i32) {
    %c0_i32 = arith.constant 0 : i32
    %c0_i32_0 = arith.constant 0 : i32
    %c0_i32_1 = arith.constant 0 : i32
    return %c0_i32, %c0_i32_0 : i32, i32
  }
  func.func @transform_3(%arg0: i32) -> (i32, i32, i32) {
    %c0_i32 = arith.constant 0 : i32
    %c0_i32_0 = arith.constant 0 : i32
    %c0_i32_1 = arith.constant 0 : i32
    return %arg0, %c0_i32, %c0_i32_0 : i32, i32, i32
  }
}

</mosaic_0001>

<llo_original>
// kernel: tpu_custom_call.1
$region0: #{tpu_custom_call.1}
  #allocation0 [shape = 'u32[]', space=smem, size = 0x4, offset = 0x4, fixed_abs, tag = 'smem constant byte address 0x4 - core index']
  #allocation1 [shape = 'u32[144,128]{1,0:T(1,128)}', space=vmem, size = 0x12000, scoped, tag = 'internal scratch']
  %s0 = inlined_call_operand.hbm [shape: f32[2,128,512], index: 0, kind: input, shape index: {}]
  %s1 = inlined_call_operand.vmem [shape: f32[8,128], index: 1, kind: input, shape index: {}]
  %s2 = inlined_call_operand.vmem [shape: f32[8,1], index: 2, kind: input, shape index: {}]
  %s3 = inlined_call_operand.hbm [shape: f32[2,8,512], index: 3, kind: output, shape index: {}]
  %s4 = sld [smem:[#allocation0]]
  $region49: #{tpu_custom_call.1} parent=0
    _
  %s6 = ssub.s32 1, %s4
  %s7 = scalar_select 0, %s6, %s4
  $region1: #{tpu_custom_call.1} parent=0
    #allocation2 [shape = 'u8[524288]{0}', space=vmem, size = 0x80000, scoped, tag = 'input window, operand 0']
    #allocation3 [shape = 's32[2]{0}', space=sflag, size = 0x8, scoped, tag = 'scoped memory for tpu_custom_call.1']
    #allocation4 [shape = 's32[2]{0}', space=sflag, size = 0x8, scoped, tag = 'scoped memory for tpu_custom_call.1']
    #allocation5 [shape = 'u8[32768]{0}', space=vmem, size = 0x8000, scoped, tag = 'output window, operand 0']
    %8 = vsyncpa [#allocation3], 0
    %s9 = scalar_lea.sflag [#allocation3], 1
    %10 = vsyncpa %s9, 0
    %11 = vsyncpa [#allocation4], 0
    %s12 = scalar_lea.sflag [#allocation4], 1
    %13 = vsyncpa %s12, 0
    loop: start=0, step=1, limit=4
    $region2: #{tpu_custom_call.1} parent=1 // loop_pre_header
      _
    $region3: #{tpu_custom_call.1} parent=1 // loop_header
      %s15 = sphi 0, %s19
      %p16 = scmp.ge.s32.totalorder %s15, 4
      %s25 = sphi 0, %s27
      %s28 = sphi 0, %s25
      %s29 = sphi 0, %s28
      %s45 = sphi 0, %s29
      %s49 = sphi 0, %s49
      %s51 = sphi 0, %s49
      %s52 = sphi 0, %s51
      %s66 = sphi 0, %s52
      %s70 = sphi 0, %s70
      %s72 = sphi 0, %s70
      %s73 = sphi 0, %s72
      %s87 = sphi 0, %s73
      %s93 = sphi 0, %s95
      %s96 = sphi 0, %s93
      %s97 = sphi 0, %s96
      %s113 = sphi 0, %s97
    $region4: #{tpu_custom_call.1} parent=1 // loop_header_branch
      %18 = sbr.rel (%p16) target = $region8
    $region5: #{tpu_custom_call.1} parent=1 // loop_body
      %s20 = ssub.s32 %s15, 1
      %s21 = ssub.s32 %s15, 2
      %s22 = sadd.s32 %s15, 1
      %s23 = ssub.s32 %s15, %s22
      %p24 = scmp.eq.s32.totalorder %s23, 0
      %s26 = sadd.s32 %s25, 1
      %s27 = scalar_select %p24, %s25, %s26
      %p30 = pneg %p24
      %p31 = scmp.eq.s32.totalorder %s15, 1
      %p32 = por %p30, %p31
      %p33 = scmp.ne.s32.totalorder %s25, %s28
      %p34 = scmp.eq.s32.totalorder %s15, 0
      %p35 = por %p33, %p34
      %p36 = scmp.ne.s32.totalorder %s25, %s28
      %p37 = scmp.eq.s32.totalorder %s20, 1
      %p38 = por %p36, %p37
      %p39 = scmp.ne.s32.totalorder %s28, %s29
      %p40 = scmp.eq.s32.totalorder %s20, 0
      %p41 = por %p39, %p40
      %p42 = scmp.ne.s32.totalorder %s28, %s29
      %p43 = scmp.eq.s32.totalorder %s21, 1
      %p44 = por %p42, %p43
      %p46 = scmp.ne.s32.totalorder %s29, %s45
      %p47 = scmp.eq.s32.totalorder %s21, 0
      %p48 = por %p46, %p47
      %s50 = sadd.s32 %s49, 1
      %p53 = scmp.eq.s32.totalorder %s15, 1
      %p54 = scmp.ne.s32.totalorder %s49, %s51
      %p55 = scmp.eq.s32.totalorder %s15, 0
      %p56 = por %p54, %p55
      %p57 = scmp.ne.s32.totalorder %s49, %s51
      %p58 = scmp.eq.s32.totalorder %s20, 1
      %p59 = por %p57, %p58
      %p60 = scmp.ne.s32.totalorder %s51, %s52
      %p61 = scmp.eq.s32.totalorder %s20, 0
      %p62 = por %p60, %p61
      %p63 = scmp.ne.s32.totalorder %s51, %s52
      %p64 = scmp.eq.s32.totalorder %s21, 1
      %p65 = por %p63, %p64
      %p67 = scmp.ne.s32.totalorder %s52, %s66
      %p68 = scmp.eq.s32.totalorder %s21, 0
      %p69 = por %p67, %p68
      %s71 = sadd.s32 %s70, 1
      %p74 = scmp.eq.s32.totalorder %s15, 1
      %p75 = scmp.ne.s32.totalorder %s70, %s72
      %p76 = scmp.eq.s32.totalorder %s15, 0
      %p77 = por %p75, %p76
      %p78 = scmp.ne.s32.totalorder %s70, %s72
      %p79 = scmp.eq.s32.totalorder %s20, 1
      %p80 = por %p78, %p79
      %p81 = scmp.ne.s32.totalorder %s72, %s73
      %p82 = scmp.eq.s32.totalorder %s20, 0
      %p83 = por %p81, %p82
      %p84 = scmp.ne.s32.totalorder %s72, %s73
      %p85 = scmp.eq.s32.totalorder %s21, 1
      %p86 = por %p84, %p85
      %p88 = scmp.ne.s32.totalorder %s73, %s87
      %p89 = scmp.eq.s32.totalorder %s21, 0
      %p90 = por %p88, %p89
      %s91 = ssub.s32 %s15, %s22
      %p92 = scmp.eq.s32.totalorder %s91, 0
      %s94 = sadd.s32 %s93, 1
      %s95 = scalar_select %p92, %s93, %s94
      %p98 = pneg %p92
      %p99 = scmp.eq.s32.totalorder %s15, 1
      %p100 = por %p98, %p99
      %p101 = scmp.ne.s32.totalorder %s93, %s96
      %p102 = scmp.eq.s32.totalorder %s15, 0
      %p103 = por %p101, %p102
      %p104 = scmp.ne.s32.totalorder %s93, %s96
      %p105 = scmp.eq.s32.totalorder %s20, 1
      %p106 = por %p104, %p105
      %p107 = scmp.ne.s32.totalorder %s96, %s97
      %p108 = scmp.eq.s32.totalorder %s20, 0
      %p109 = por %p107, %p108
      %p110 = scmp.ne.s32.totalorder %s96, %s97
      %p111 = scmp.eq.s32.totalorder %s21, 1
      %p112 = por %p110, %p111
      %p114 = scmp.ne.s32.totalorder %s97, %s113
      %p115 = scmp.eq.s32.totalorder %s21, 0
      %p116 = por %p114, %p115
      %p117 = scmp.le.s32.totalorder 1, %s15
      %p118 = scmp.lt.s32.totalorder %s15, 3
      %p119 = pnand %p117, %p118
      %p120 = pneg %p119
      // Predicated region
      $region9: #{tpu_custom_call.1} parent=5 // pred_check
        _
      $region10: #{tpu_custom_call.1} parent=5 // pred_check_branch
        %122 = sbr.rel (%p119) target = $region12
      $region11: #{tpu_custom_call.1} parent=5 // pred_region
        %s123 = ssub.s32 %s15, 1
        // Predicated region
        $region13: #{tpu_custom_call.1} parent=11 // pred_check
          %p124 = pneg %p62
        $region14: #{tpu_custom_call.1} parent=11 // pred_check_branch
          %126 = sbr.rel (%p124) target = $region16
        $region15: #{tpu_custom_call.1} parent=11 // pred_region
          _
        $region16: #{tpu_custom_call.1} parent=11 // pred_fallthru
          _
        // Predicated region
        $region17: #{tpu_custom_call.1} parent=11 // pred_check
          %p127 = pneg %p83
        $region18: #{tpu_custom_call.1} parent=11 // pred_check_branch
          %129 = sbr.rel (%p127) target = $region20
        $region19: #{tpu_custom_call.1} parent=11 // pred_region
          _
        $region20: #{tpu_custom_call.1} parent=11 // pred_fallthru
          _
      $region12: #{tpu_custom_call.1} parent=5 // pred_fallthru
        _
      %p130 = scmp.lt.s32.totalorder %s15, 2
      // Predicated region
      $region21: #{tpu_custom_call.1} parent=5 // pred_check
        %p131 = pneg %p130
      $region22: #{tpu_custom_call.1} parent=5 // pred_check_branch
        %133 = sbr.rel (%p131) target = $region24
      $region23: #{tpu_custom_call.1} parent=5 // pred_region
        // Predicated region
        $region25: #{tpu_custom_call.1} parent=23 // pred_check
          %p134 = pneg %p35
        $region26: #{tpu_custom_call.1} parent=23 // pred_check_branch
          %136 = sbr.rel (%p134) target = $region28
        $region27: #{tpu_custom_call.1} parent=23 // pred_region
          %s137 = sand.u32 %s25, 1
          %s138 = scalar_lea.sflag [#allocation3], %s137
          %s139 = sand.u32 %s25, 1
          %s140 = smul.addr %s139, 512
          %s141 = scalar_lea.vmem [#allocation2], %s140
          %s143 = ssub.s32 8192, 8192
          %144 = vsyncadd %s138, %s143
          %s145 = smul.addr %s15, 64
          %s146 = smul.addr %s145, 128
          %s147 = scalar_lea.hbm %s0, %s146
          %s148 = sshll.u32 %s141, 4
          %s149 = int_to_ptr.vmem [resolvable:$true] %s148
          %154 = dma.hbm_to_vmem [thread:$0]  %s147, 8192, %s149, %s138, 512, 512, 32
        $region28: #{tpu_custom_call.1} parent=23 // pred_fallthru
          _
      $region24: #{tpu_custom_call.1} parent=5 // pred_fallthru
        _
      %p155 = scmp.le.s32.totalorder 1, %s15
      %p156 = scmp.lt.s32.totalorder %s15, 3
      %p157 = pnand %p155, %p156
      %p158 = pneg %p157
      // Predicated region
      $region29: #{tpu_custom_call.1} parent=5 // pred_check
        _
      $region30: #{tpu_custom_call.1} parent=5 // pred_check_branch
        %160 = sbr.rel (%p157) target = $region32
      $region31: #{tpu_custom_call.1} parent=5 // pred_region
        %s161 = ssub.s32 %s15, 1
        %s162 = sand.u32 %s28, 1
        %s163 = scalar_lea.sflag [#allocation3], %s162
        %s164 = sand.u32 %s28, 1
        %s165 = smul.addr %s164, 512
        %s166 = scalar_lea.vmem [#allocation2], %s165
        // Predicated region
        $region33: #{tpu_custom_call.1} parent=31 // pred_check
          %p167 = pneg %p41
        $region34: #{tpu_custom_call.1} parent=31 // pred_check_branch
          %169 = sbr.rel (%p167) target = $region36
        $region35: #{tpu_custom_call.1} parent=31 // pred_region
          %170 = dma.done %s163, 8192
        $region36: #{tpu_custom_call.1} parent=31 // pred_fallthru
          _
        %s171 = sand.u32 %s28, 1
        %s172 = scalar_lea.sflag [#allocation3], %s171
        %s173 = sand.u32 %s28, 1
        %s174 = smul.addr %s173, 512
        %s175 = scalar_lea.vmem [#allocation2], %s174
        %p176 = pneg %p41
        %p177 = pneg %p38
        %p178 = pneg %p62
        %p179 = pneg %p59
        %p180 = pneg %p83
        %p181 = pneg %p80
        %p182 = pneg %p109
        %p183 = pneg %p106
        %s184 = sand.u32 %s96, 1
        %s185 = scalar_lea.sflag [#allocation4], %s184
        %s186 = sand.u32 %s96, 1
        %s187 = smul.addr %s186, 32
        %s188 = scalar_lea.vmem [#allocation5], %s187
        %v189 = vld [vmem:[%s166] sm:$0xff]
        %v190 = vld [vmem:[%s166 + $0x8] sm:$0xff]
        %v191 = vld [vmem:[%s166 + $0x10] sm:$0xff]
        %v192 = vld [vmem:[%s166 + $0x18] sm:$0xff]
        %v193 = vld [vmem:[%s166 + $0x20] sm:$0xff]
        %v194 = vld [vmem:[%s166 + $0x28] sm:$0xff]
        %v195 = vld [vmem:[%s166 + $0x30] sm:$0xff]
        %v196 = vld [vmem:[%s166 + $0x38] sm:$0xff]
        %v197 = vld [vmem:[%s166 + $0x40] sm:$0xff]
        %v198 = vld [vmem:[%s166 + $0x48] sm:$0xff]
        %v199 = vld [vmem:[%s166 + $0x50] sm:$0xff]
        %v200 = vld [vmem:[%s166 + $0x58] sm:$0xff]
        %v201 = vld [vmem:[%s166 + $0x60] sm:$0xff]
        %v202 = vld [vmem:[%s166 + $0x68] sm:$0xff]
        %v203 = vld [vmem:[%s166 + $0x70] sm:$0xff]
        %v204 = vld [vmem:[%s166 + $0x78] sm:$0xff]
        %v205 = vld [vmem:[%s166 + $0x80] sm:$0xff]
        %v206 = vld [vmem:[%s166 + $0x88] sm:$0xff]
        %v207 = vld [vmem:[%s166 + $0x90] sm:$0xff]
        %v208 = vld [vmem:[%s166 + $0x98] sm:$0xff]
        %v209 = vld [vmem:[%s166 + $0xa0] sm:$0xff]
        %v210 = vld [vmem:[%s166 + $0xa8] sm:$0xff]
        %v211 = vld [vmem:[%s166 + $0xb0] sm:$0xff]
        %v212 = vld [vmem:[%s166 + $0xb8] sm:$0xff]
        %v213 = vld [vmem:[%s166 + $0xc0] sm:$0xff]
        %v214 = vld [vmem:[%s166 + $0xc8] sm:$0xff]
        %v215 = vld [vmem:[%s166 + $0xd0] sm:$0xff]
        %v216 = vld [vmem:[%s166 + $0xd8] sm:$0xff]
        %v217 = vld [vmem:[%s166 + $0xe0] sm:$0xff]
        %v218 = vld [vmem:[%s166 + $0xe8] sm:$0xff]
        %v219 = vld [vmem:[%s166 + $0xf0] sm:$0xff]
        %v220 = vld [vmem:[%s166 + $0xf8] sm:$0xff]
        %v221 = vld [vmem:[%s166 + $0x100] sm:$0xff]
        %v222 = vld [vmem:[%s166 + $0x108] sm:$0xff]
        %v223 = vld [vmem:[%s166 + $0x110] sm:$0xff]
        %v224 = vld [vmem:[%s166 + $0x118] sm:$0xff]
        %v225 = vld [vmem:[%s166 + $0x120] sm:$0xff]
        %v226 = vld [vmem:[%s166 + $0x128] sm:$0xff]
        %v227 = vld [vmem:[%s166 + $0x130] sm:$0xff]
        %v228 = vld [vmem:[%s166 + $0x138] sm:$0xff]
        %v229 = vld [vmem:[%s166 + $0x140] sm:$0xff]
        %v230 = vld [vmem:[%s166 + $0x148] sm:$0xff]
        %v231 = vld [vmem:[%s166 + $0x150] sm:$0xff]
        %v232 = vld [vmem:[%s166 + $0x158] sm:$0xff]
        %v233 = vld [vmem:[%s166 + $0x160] sm:$0xff]
        %v234 = vld [vmem:[%s166 + $0x168] sm:$0xff]
        %v235 = vld [vmem:[%s166 + $0x170] sm:$0xff]
        %v236 = vld [vmem:[%s166 + $0x178] sm:$0xff]
        %v237 = vld [vmem:[%s166 + $0x180] sm:$0xff]
        %v238 = vld [vmem:[%s166 + $0x188] sm:$0xff]
        %v239 = vld [vmem:[%s166 + $0x190] sm:$0xff]
        %v240 = vld [vmem:[%s166 + $0x198] sm:$0xff]
        %v241 = vld [vmem:[%s166 + $0x1a0] sm:$0xff]
        %v242 = vld [vmem:[%s166 + $0x1a8] sm:$0xff]
        %v243 = vld [vmem:[%s166 + $0x1b0] sm:$0xff]
        %v244 = vld [vmem:[%s166 + $0x1b8] sm:$0xff]
        %v245 = vld [vmem:[%s166 + $0x1c0] sm:$0xff]
        %v246 = vld [vmem:[%s166 + $0x1c8] sm:$0xff]
        %v247 = vld [vmem:[%s166 + $0x1d0] sm:$0xff]
        %v248 = vld [vmem:[%s166 + $0x1d8] sm:$0xff]
        %v249 = vld [vmem:[%s166 + $0x1e0] sm:$0xff]
        %v250 = vld [vmem:[%s166 + $0x1e8] sm:$0xff]
        %v251 = vld [vmem:[%s166 + $0x1f0] sm:$0xff]
        %v252 = vld [vmem:[%s166 + $0x1f8] sm:$0xff]
        %v253 = vld [vmem:[%s1] sm:$0xff]
        %v254 = vld [vmem:[%s2] sm:$0xff]
        %256 = vset.pattern.permute.xlu0 0
        %257 = vperm.xlu0 %256, %v254
        %v258 = vpop.permute.xlu0 %257
        %260 = vmatprep.subr.mxu0 %v190
        %261 = vmatpush1.msra.mxu0 %v189
        %262 = vmatprep.subr.mxu0 %v194
        %263 = vmatpush1.msra.mxu0 %v193
        %264 = vmatprep.subr.mxu0 %v198
        %265 = vmatpush1.msra.mxu0 %v197
        %266 = vmatprep.subr.mxu0 %v202
        %267 = vmatpush1.msra.mxu0 %v201
        %268 = vmatprep.subr.mxu0 %v206
        %269 = vmatpush1.msra.mxu0 %v205
        %270 = vmatprep.subr.mxu0 %v210
        %271 = vmatpush1.msra.mxu0 %v209
        %272 = vmatprep.subr.mxu0 %v214
        %273 = vmatpush1.msra.mxu0 %v213
        %274 = vmatprep.subr.mxu0 %v218
        %275 = vmatpush1.msra.mxu0 %v217
        %276 = vmatprep.subr.mxu0 %v222
        %277 = vmatpush1.msra.mxu0 %v221
        %278 = vmatprep.subr.mxu0 %v226
        %279 = vmatpush1.msra.mxu0 %v225
        %280 = vmatprep.subr.mxu0 %v230
        %281 = vmatpush1.msra.mxu0 %v229
        %282 = vmatprep.subr.mxu0 %v234
        %283 = vmatpush1.msra.mxu0 %v233
        %284 = vmatprep.subr.mxu0 %v238
        %285 = vmatpush1.msra.mxu0 %v237
        %286 = vmatprep.subr.mxu0 %v242
        %287 = vmatpush1.msra.mxu0 %v241
        %288 = vmatprep.subr.mxu0 %v246
        %289 = vmatpush1.msra.mxu0 %v245
        %290 = vmatprep.subr.mxu0 %v250
        %291 = vmatpush1.msra.mxu0 %v249
        %292 = vmatprep.subr.mxu0 0.0
        %293 = vmatpush1.msra.mxu0 0.0
        %294 = vmatprep.subr.mxu0 0.0
        %295 = vmatpush1.msra.mxu0 0.0
        %296 = vmatprep.subr.mxu0 0.0
        %297 = vmatpush1.msra.mxu0 0.0
        %298 = vmatprep.subr.mxu0 0.0
        %299 = vmatpush1.msra.mxu0 0.0
        %300 = vmatprep.subr.mxu0 0.0
        %301 = vmatpush1.msra.mxu0 0.0
        %302 = vmatprep.subr.mxu0 0.0
        %303 = vmatpush1.msra.mxu0 0.0
        %304 = vmatprep.subr.mxu0 0.0
        %305 = vmatpush1.msra.mxu0 0.0
        %306 = vmatprep.subr.mxu0 0.0
        %307 = vmatpush1.msra.mxu0 0.0
        %308 = vmatprep.subr.mxu0 0.0
        %309 = vmatpush1.msra.mxu0 0.0
        %310 = vmatprep.subr.mxu0 0.0
        %311 = vmatpush1.msra.mxu0 0.0
        %312 = vmatprep.subr.mxu0 0.0
        %313 = vmatpush1.msra.mxu0 0.0
        %314 = vmatprep.subr.mxu0 0.0
        %315 = vmatpush1.msra.mxu0 0.0
        %316 = vmatprep.subr.mxu0 0.0
        %317 = vmatpush1.msra.mxu0 0.0
        %318 = vmatprep.subr.mxu0 0.0
        %319 = vmatpush1.msra.mxu0 0.0
        %320 = vmatprep.subr.mxu0 0.0
        %321 = vmatpush1.msra.mxu0 0.0
        %322 = vmatprep.subr.mxu0 0.0
        %323 = vmatpush1.msra.mxu0 0.0
        %324 = vmatprep.mubr.f32.mxu0 0.0
        %325 = vmatmul.mubr.f32.gmra.mrb[0].mxu0 %v253
        %v326 = vpop.f32.mrb[0].mxu0
        %v327 = vadd.f32 %v258, %v326
        %v328 = vpop.f32.mrb[0].mxu0
        %v329 = vadd.f32 %v258, %v328
        %330 = vdwg.mxu0
        %331 = vmatprep.subr.mxu0 %v192
        %332 = vmatpush1.msra.mxu0 %v191
        %333 = vmatprep.subr.mxu0 %v196
        %334 = vmatpush1.msra.mxu0 %v195
        %335 = vmatprep.subr.mxu0 %v200
        %336 = vmatpush1.msra.mxu0 %v199
        %337 = vmatprep.subr.mxu0 %v204
        %338 = vmatpush1.msra.mxu0 %v203
        %339 = vmatprep.subr.mxu0 %v208
        %340 = vmatpush1.msra.mxu0 %v207
        %341 = vmatprep.subr.mxu0 %v212
        %342 = vmatpush1.msra.mxu0 %v211
        %343 = vmatprep.subr.mxu0 %v216
        %344 = vmatpush1.msra.mxu0 %v215
        %345 = vmatprep.subr.mxu0 %v220
        %346 = vmatpush1.msra.mxu0 %v219
        %347 = vmatprep.subr.mxu0 %v224
        %348 = vmatpush1.msra.mxu0 %v223
        %349 = vmatprep.subr.mxu0 %v228
        %350 = vmatpush1.msra.mxu0 %v227
        %351 = vmatprep.subr.mxu0 %v232
        %352 = vmatpush1.msra.mxu0 %v231
        %353 = vmatprep.subr.mxu0 %v236
        %354 = vmatpush1.msra.mxu0 %v235
        %355 = vmatprep.subr.mxu0 %v240
        %356 = vmatpush1.msra.mxu0 %v239
        %357 = vmatprep.subr.mxu0 %v244
        %358 = vmatpush1.msra.mxu0 %v243
        %359 = vmatprep.subr.mxu0 %v248
        %360 = vmatpush1.msra.mxu0 %v247
        %361 = vmatprep.subr.mxu0 %v252
        %362 = vmatpush1.msra.mxu0 %v251
        %363 = vmatprep.subr.mxu0 0.0
        %364 = vmatpush1.msra.mxu0 0.0
        %365 = vmatprep.subr.mxu0 0.0
        %366 = vmatpush1.msra.mxu0 0.0
        %367 = vmatprep.subr.mxu0 0.0
        %368 = vmatpush1.msra.mxu0 0.0
        %369 = vmatprep.subr.mxu0 0.0
        %370 = vmatpush1.msra.mxu0 0.0
        %371 = vmatprep.subr.mxu0 0.0
        %372 = vmatpush1.msra.mxu0 0.0
        %373 = vmatprep.subr.mxu0 0.0
        %374 = vmatpush1.msra.mxu0 0.0
        %375 = vmatprep.subr.mxu0 0.0
        %376 = vmatpush1.msra.mxu0 0.0
        %377 = vmatprep.subr.mxu0 0.0
        %378 = vmatpush1.msra.mxu0 0.0
        %379 = vmatprep.subr.mxu0 0.0
        %380 = vmatpush1.msra.mxu0 0.0
        %381 = vmatprep.subr.mxu0 0.0
        %382 = vmatpush1.msra.mxu0 0.0
        %383 = vmatprep.subr.mxu0 0.0
        %384 = vmatpush1.msra.mxu0 0.0
        %385 = vmatprep.subr.mxu0 0.0
        %386 = vmatpush1.msra.mxu0 0.0
        %387 = vmatprep.subr.mxu0 0.0
        %388 = vmatpush1.msra.mxu0 0.0
        %389 = vmatprep.subr.mxu0 0.0
        %390 = vmatpush1.msra.mxu0 0.0
        %391 = vmatprep.subr.mxu0 0.0
        %392 = vmatpush1.msra.mxu0 0.0
        %393 = vmatprep.subr.mxu0 0.0
        %394 = vmatpush1.msra.mxu0 0.0
        %395 = vmatprep.mubr.f32.mxu0 0.0
        %396 = vmatmul.mubr.f32.gmra.mrb[0].mxu0 %v253
        %v397 = vpop.f32.mrb[0].mxu0
        %v398 = vadd.f32 %v258, %v397
        %v399 = vpop.f32.mrb[0].mxu0
        %v400 = vadd.f32 %v258, %v399
        %401 = vdwg.mxu0
        %vm402 = vcmp.ge.f32.partialorder %v327, 0.0
        %vm403 = vcmp.ge.f32.partialorder %v329, 0.0
        %vm404 = vcmp.ge.f32.partialorder %v398, 0.0
        %vm405 = vcmp.ge.f32.partialorder %v400, 0.0
        %v406 = vmul.f32 %v327, 0.2
        %v407 = vmul.f32 %v329, 0.2
        %v408 = vmul.f32 %v398, 0.2
        %v409 = vmul.f32 %v400, 0.2
        %v410 = vsel %vm402, %v327, %v406
        %v411 = vsel %vm403, %v329, %v407
        %v412 = vsel %vm404, %v398, %v408
        %v413 = vsel %vm405, %v400, %v409
        %414 = vst [vmem:[%s188] sm:$0xff] %v410
        %415 = vst [vmem:[%s188 + $0x8] sm:$0xff] %v411
        %416 = vst [vmem:[%s188 + $0x10] sm:$0xff] %v412
        %417 = vst [vmem:[%s188 + $0x18] sm:$0xff] %v413
        %s418 = sand.u32 %s96, 1
        %s419 = scalar_lea.sflag [#allocation4], %s418
        %s420 = sand.u32 %s96, 1
        %s421 = smul.addr %s420, 32
        %s422 = scalar_lea.vmem [#allocation5], %s421
        // Predicated region
        $region37: #{tpu_custom_call.1} parent=31 // pred_check
          %p423 = pneg %p106
        $region38: #{tpu_custom_call.1} parent=31 // pred_check_branch
          %425 = sbr.rel (%p423) target = $region40
        $region39: #{tpu_custom_call.1} parent=31 // pred_region
          %s427 = ssub.s32 512, 512
          %428 = vsyncadd %s419, %s427
          %s429 = smul.addr %s20, 4
          %s430 = smul.addr %s429, 128
          %s431 = scalar_lea.hbm %s3, %s430
          %s433 = sshll.u32 %s422, 4
          %s434 = int_to_ptr.vmem [resolvable:$true] %s433
          %436 = dma.vmem_to_hbm [thread:$0]  %s434, 512, %s431, %s419
        $region40: #{tpu_custom_call.1} parent=31 // pred_fallthru
          _
      $region32: #{tpu_custom_call.1} parent=5 // pred_fallthru
        _
      %p437 = scmp.le.s32.totalorder 2, %s15
      // Predicated region
      $region41: #{tpu_custom_call.1} parent=5 // pred_check
        %p438 = pneg %p437
      $region42: #{tpu_custom_call.1} parent=5 // pred_check_branch
        %440 = sbr.rel (%p438) target = $region44
      $region43: #{tpu_custom_call.1} parent=5 // pred_region
        %s441 = ssub.s32 %s15, 2
        // Predicated region
        $region45: #{tpu_custom_call.1} parent=43 // pred_check
          %p442 = pneg %p112
        $region46: #{tpu_custom_call.1} parent=43 // pred_check_branch
          %444 = sbr.rel (%p442) target = $region48
        $region47: #{tpu_custom_call.1} parent=43 // pred_region
          %s445 = sand.u32 %s97, 1
          %s446 = scalar_lea.sflag [#allocation4], %s445
          %s447 = sand.u32 %s97, 1
          %s448 = smul.addr %s447, 32
          %s449 = scalar_lea.vmem [#allocation5], %s448
          %450 = dma.done %s446, 512
        $region48: #{tpu_custom_call.1} parent=43 // pred_fallthru
          _
      $region44: #{tpu_custom_call.1} parent=5 // pred_fallthru
        _
    $region6: #{tpu_custom_call.1} parent=1 // loop_footer
      %s19 = sadd.s32 1, %s15
    $region7: #{tpu_custom_call.1} parent=1 // loop_footer_branch
      %14 = sbr.rel target = $region3
    $region8: #{tpu_custom_call.1} parent=1 // loop_exit
      _
    %451 = vsyncpa [#allocation3], 1
    %s452 = scalar_lea.sflag [#allocation3], 1
    %453 = vsyncpa %s452, 1
    %454 = vsyncpa [#allocation4], 1
    %s455 = scalar_lea.sflag [#allocation4], 1
    %456 = vsyncpa %s455, 1

</llo_original>
